<compile_context>
chip_gen: v5e
topology: v5e:2x2
jax: 0.10.0
libtpu: 0.0.40
codegen_flags: <defaults>
</compile_context>

<pallas_src>
import functools

import jax
import jax.numpy as jnp
from jax import lax
from jax.experimental import pallas as pl
from jax.experimental.pallas import tpu as pltpu

EPS = 1e-5
_MAX_TM = 1024            # row-tile cap (mem-bound kernel)


def _round_up(x, m):
    return (x + m - 1) // m * m


def _prenorm_residual_kernel(x_ref, w_ref, b_ref, o_ref, *scratch, tn, n_col_tiles):
    """One (tm, D) row tile -> one (tm, tn) output-column tile.

    x_ref : (tm, D)   input rows
    w_ref : (D, tn)   gamma-folded weight slab (bf16 or f32)
    b_ref : (1, tn)   beta-folded bias (f32)
    o_ref : (tm, tn)  output tile
    scratch (tiled path only): xn_ref (tm, D) cached normalized rows (MXU dtype)
    """
    inv_d = 1.0 / x_ref.shape[-1]

    def _layernorm(x):
        # Fused statistics: sum(x) and sum(x*x) have no serial dependency.
        s1 = jnp.sum(x, axis=-1, keepdims=True)
        s2 = jnp.sum(x * x, axis=-1, keepdims=True)
        mean = s1 * inv_d
        var = jnp.maximum(s2 * inv_d - mean * mean, 0.0)
        return (x - mean) * lax.rsqrt(var + EPS)

    if n_col_tiles == 1:
        x = x_ref[...].astype(jnp.float32)
        xn = _layernorm(x).astype(w_ref.dtype)
        y = jnp.dot(xn, w_ref[...], preferred_element_type=jnp.float32)
        o_ref[...] = (y + b_ref[...].astype(jnp.float32) + x).astype(o_ref.dtype)
    else:
        (xn_ref,) = scratch
        j = pl.program_id(1)

        # LayerNorm (upcast, reductions, rsqrt, MXU-dtype cast) done ONCE per
        # row tile; cached xn is reused for every output-column tile.
        @pl.when(j == 0)
        def _():
            x = x_ref[...].astype(jnp.float32)
            xn_ref[...] = _layernorm(x).astype(xn_ref.dtype)

        col = pl.multiple_of(j * tn, tn)
        x_res = x_ref[:, pl.ds(col, tn)].astype(jnp.float32)
        y = jnp.dot(xn_ref[...], w_ref[...], preferred_element_type=jnp.float32)
        o_ref[...] = (y + b_ref[...].astype(jnp.float32) + x_res).astype(o_ref.dtype)


def _vmem_capacity_bytes():
    try:
        info = pltpu.get_tpu_info()
        cap = getattr(info, "vmem_capacity_bytes", None)
        if cap:
            return int(cap)
    except Exception:
        pass
    return 64 << 20   # conservative default (v7x per-TC VMEM)


def _weight_col_candidates(D):
    """Output-column tile candidates: D, D/2, ... down to a 256 floor; 128 only
    as a last resort (half-width on the 256-wide v6e/v7x MXU, fine on v5e)."""
    cands = [D]
    t = D
    while t % 2 == 0 and t // 2 >= 256 and D % (t // 2) == 0:
        t //= 2
        cands.append(t)
    if t % 2 == 0 and t // 2 == 128 and D % 128 == 0:
        cands.append(128)
    return cands


def _choose_tiles(rows, D, x_itemsize, w_itemsize, budget, sub, tn_force=None):
    """Pick (tm, tn): biggest row tile keeping resident VMEM under budget."""
    if tn_force is not None:
        tn = tn_force
    else:
        tn = D
        if D % 128 == 0:
            cands = _weight_col_candidates(D)
            for cand in cands:
                bufs = 1 if cand == D else 2   # full weight is single-buffered
                if bufs * D * cand * w_itemsize <= (budget * 7) // 10:
                    tn = cand
                    break
            else:
                tn = cands[-1]

    w_bufs = 1 if tn == D else 2
    w_resident = w_bufs * D * tn * w_itemsize + w_bufs * tn * 4
    remaining = max(budget - w_resident, 1 << 20)
    xn_cache = D * w_itemsize if tn != D else 0
    per_row = (2 * D * x_itemsize      # x tile (double-buffered)
               + 2 * tn * x_itemsize   # out tile (double-buffered)
               + 3 * D * 4             # f32 x / xn / LN temporaries
               + tn * 4                # f32 matmul accumulator
               + xn_cache)             # cached xn (tiled path)
    tm = (remaining // per_row) // sub * sub
    # Keep f32 intermediates in the ~4 MiB class: larger tiles buy <1% BW.
    tm_cap = max(sub, ((4 << 20) // (D * 4)) // sub * sub)
    tm = max(sub, min(tm, _MAX_TM, tm_cap))
    tm = min(tm, _round_up(rows, sub))

    # Megacore: aim for >= 4 row-grid steps (>= 2 per v7x TensorCore) so the
    # pipeline can overlap on both cores; no-op for small row counts.
    if rows >= 4 * sub and _round_up(rows, tm) // tm < 4:
        tm = _round_up(-(-rows // 4), sub)
    return tm, tn


def prenorm_residual(x, gamma, beta, w, b, *, mxu_dtype=jnp.bfloat16, tn=None):
    """PreNormResidual (transpose=False) with fn = Linear(dim, dim).

    x     : (B, N, D)
    gamma : (D,)   LayerNorm weight
    beta  : (D,)   LayerNorm bias
    w     : (D, D) Linear weight stored (in, out)  (i.e. torch weight.T)
    b     : (D,)   Linear bias
    """
    B, N, D = x.shape
    rows = B * N

    # ---- one-time parameter prep (outside the kernel) ----------------------
    # Fold the LayerNorm affine into the Linear:
    #   (xn*g + be) @ W + b  ==  xn @ (g[:, None] * W) + (be @ W + b)
    w_f32 = w.astype(jnp.float32)
    w_fold = (gamma.astype(jnp.float32)[:, None] * w_f32).astype(mxu_dtype)
    b_fold = (beta.astype(jnp.float32) @ w_f32
              + b.astype(jnp.float32)).reshape(1, D)
    # TODO(synk): on v7x an fp8(e4m3) folded weight + per-column scale in the
    # f32 epilogue would halve weight VMEM; omitted pending accuracy validation.

    # ---- tiling -------------------------------------------------------------
    x_itemsize = jnp.dtype(x.dtype).itemsize
    w_itemsize = jnp.dtype(mxu_dtype).itemsize
    sub = (4 // x_itemsize) * 8          # sublane multiple: 8 f32 / 16 bf16 / 32 i8

    vmem_cap = _vmem_capacity_bytes()
    budget = max(min((vmem_cap * 3) // 4, vmem_cap - (20 << 20)), 24 << 20)

    if tn is not None:
        assert D % tn == 0 and (tn == D or tn % 128 == 0), "bad tn override"
    tm, tn = _choose_tiles(rows, D, x_itemsize, w_itemsize, budget, sub,
                           tn_force=tn)
    n_col_tiles = D // tn

    # Pad the row count to a multiple of the tile (zero rows are numerically
    # safe: var + eps > 0; they are sliced away afterwards).
    rows_p = _round_up(rows, tm)
    x2 = x.reshape(rows, D)
    if rows_p != rows:
        x2 = jnp.pad(x2, ((0, rows_p - rows), (0, 0)))

    # ---- VMEM accounting + compiler params ----------------------------------
    w_bufs = 1 if n_col_tiles == 1 else 2
    xn_cache = 0 if n_col_tiles == 1 else tm * D * w_itemsize
    resident = (2 * tm * D * x_itemsize            # x tile, double-buffered
                + 2 * tm * tn * x_itemsize         # out tile, double-buffered
                + w_bufs * D * tn * w_itemsize     # weight slab
                + w_bufs * tn * 4                  # bias slab
                + xn_cache                         # xn cache scratch
                + 3 * tm * D * 4 + tm * tn * 4)    # f32 LN temporaries / accum
    cap = vmem_cap - (16 << 20)                    # leave room for Mosaic internals
    vmem_limit = int(max(min(resident + (8 << 20), cap),
                         resident + (4 << 20),     # never below resident + headroom
                         32 << 20))
    vmem_limit = min(vmem_limit, vmem_cap)

    if n_col_tiles == 1:
        # Constant index maps -> single-buffer the weight/bias (saves VMEM).
        w_spec = pl.BlockSpec((D, tn), lambda i, j: (0, 0),
                              pipeline_mode=pl.Buffered(1))
        b_spec = pl.BlockSpec((1, tn), lambda i, j: (0, 0),
                              pipeline_mode=pl.Buffered(1))
        scratch_shapes = []
        dim_sem = ("parallel", "parallel")
    else:
        w_spec = pl.BlockSpec((D, tn), lambda i, j: (0, j))
        b_spec = pl.BlockSpec((1, tn), lambda i, j: (0, j))
        scratch_shapes = [pltpu.VMEM((tm, D), mxu_dtype)]   # cached xn
        dim_sem = ("parallel", "arbitrary")  # scratch carries state across j

    kernel = functools.partial(_prenorm_residual_kernel,
                               tn=tn, n_col_tiles=n_col_tiles)

    out2 = pl.pallas_call(
        kernel,
        out_shape=jax.ShapeDtypeStruct((rows_p, D), x.dtype),
        grid_spec=pltpu.PrefetchScalarGridSpec(
            num_scalar_prefetch=0,
            grid=(rows_p // tm, n_col_tiles),
            in_specs=[
                pl.BlockSpec((tm, D), lambda i, j: (i, 0)),   # x rows (revisit-elided over j)
                w_spec,                                        # weight slab
                b_spec,                                        # bias slab
            ],
            out_specs=pl.BlockSpec((tm, tn), lambda i, j: (i, j)),
            scratch_shapes=scratch_shapes,
        ),
        compiler_params=pltpu.CompilerParams(
            dimension_semantics=dim_sem,
            vmem_limit_bytes=vmem_limit),
    )(x2, w_fold, b_fold)

    if rows_p != rows:
        out2 = out2[:rows]
    return out2.reshape(B, N, D)


def _reference(x, gamma, beta, w, b):
    mean = jnp.mean(x, axis=-1, keepdims=True)
    var = jnp.mean((x - mean) ** 2, axis=-1, keepdims=True)
    xn = (x - mean) / jnp.sqrt(var + EPS) * gamma + beta
    return xn @ w + b + x


if __name__ == "__main__":
    key = jax.random.PRNGKey(0)

    # Case 1: small but lane-dense shapes (D multiple of 128), resident-weight path.
    B, N, D = 2, 8, 128
    kx, kg, kb, kw, kbias = jax.random.split(key, 5)
    x = jax.random.normal(kx, (B, N, D), dtype=jnp.float32)
    gamma = 1.0 + 0.01 * jax.random.normal(kg, (D,), jnp.float32)
    beta = 0.01 * jax.random.normal(kb, (D,), jnp.float32)
    # nn.Linear(dim, dim) weight (out, in) -> stored transposed (in, out).
    w = (jax.random.normal(kw, (D, D), jnp.float32) / jnp.sqrt(D)).T
    b = 0.01 * jax.random.normal(kbias, (D,), jnp.float32)

    ref = _reference(x, gamma, beta, w, b)

    out_bf16 = prenorm_residual(x, gamma, beta, w, b)  # default bf16 MXU feed
    jax.block_until_ready(out_bf16)
    assert jnp.allclose(out_bf16, ref, atol=5e-2, rtol=5e-2), "bf16 path mismatch"

    out_f32 = prenorm_residual(x, gamma, beta, w, b, mxu_dtype=jnp.float32)
    jax.block_until_ready(out_f32)
    assert jnp.allclose(out_f32, ref, atol=2e-4, rtol=2e-4), "f32 path mismatch"

    # Case 2: rows not a multiple of the tile (padding path) + forced
    # output-column tiling (exercises the cached-xn tiled path).
    B2, N2, D2 = 3, 5, 256
    kx2, kw2 = jax.random.split(kx)
    x_b = jax.random.normal(kx2, (B2, N2, D2), dtype=jnp.float32)
    gamma_b = jnp.ones((D2,), jnp.float32)
    beta_b = jnp.zeros((D2,), jnp.float32)
    w_b = (jax.random.normal(kw2, (D2, D2), jnp.float32) / jnp.sqrt(D2)).T
    b_b = jnp.zeros((D2,), jnp.float32)

    ref_b = _reference(x_b, gamma_b, beta_b, w_b, b_b)
    out_b = prenorm_residual(x_b, gamma_b, beta_b, w_b, b_b,
                             mxu_dtype=jnp.float32, tn=128)
    jax.block_until_ready(out_b)
    assert jnp.allclose(out_b, ref_b, atol=2e-4, rtol=2e-4), "tiled path mismatch"

    print("KERNEL_OK")
</pallas_src>

<mosaic_0001>
module attributes {stable_mosaic.version = 11 : i64} {
  func.func @_prenorm_residual_kernel(%arg0: i32, %arg1: i32, %arg2: memref<16x128xf32, #tpu.memory_space<vmem>>, %arg3: memref<128x128xbf16, #tpu.memory_space<vmem>>, %arg4: memref<1x128xf32, #tpu.memory_space<vmem>>, %arg5: memref<16x128xf32, #tpu.memory_space<vmem>>) attributes {dimension_semantics = [#tpu.dimension_semantics<parallel>, #tpu.dimension_semantics<parallel>], iteration_bounds = array<i64: 1, 1>, scalar_prefetch = 0 : i64, scratch_operands = 0 : i64, tpu.core_type = #tpu.core_type<tc>, window_params = [{transform_indices = @transform_0, window_bounds = array<i64: 16, 128>}, {pipeline_mode = #tpu.pipeline_mode<synchronous>, transform_indices = @transform_1, window_bounds = array<i64: 128, 128>}, {pipeline_mode = #tpu.pipeline_mode<synchronous>, transform_indices = @transform_2, window_bounds = array<i64: 1, 128>}, {transform_indices = @transform_3, window_bounds = array<i64: 16, 128>}]} {
    %c0 = arith.constant 0 : index
    %c0_0 = arith.constant 0 : index
    %0 = vector.load %arg2[%c0, %c0_0] : memref<16x128xf32, #tpu.memory_space<vmem>>, vector<16x128xf32>
    %cst = arith.constant dense<0.000000e+00> : vector<16xf32>
    %1 = vector.multi_reduction <add>, %0, %cst [1] : vector<16x128xf32> to vector<16xf32>
    %2 = vector.shape_cast %1 : vector<16xf32> to vector<16x1xf32>
    %3 = arith.mulf %0, %0 : vector<16x128xf32>
    %cst_1 = arith.constant dense<0.000000e+00> : vector<16xf32>
    %4 = vector.multi_reduction <add>, %3, %cst_1 [1] : vector<16x128xf32> to vector<16xf32>
    %5 = vector.shape_cast %4 : vector<16xf32> to vector<16x1xf32>
    %cst_2 = arith.constant 7.812500e-03 : f32
    %6 = vector.broadcast %cst_2 : f32 to vector<16x1xf32>
    %7 = arith.mulf %2, %6 : vector<16x1xf32>
    %cst_3 = arith.constant 7.812500e-03 : f32
    %8 = vector.broadcast %cst_3 : f32 to vector<16x1xf32>
    %9 = arith.mulf %5, %8 : vector<16x1xf32>
    %10 = arith.mulf %7, %7 : vector<16x1xf32>
    %11 = arith.subf %9, %10 : vector<16x1xf32>
    %cst_4 = arith.constant 0.000000e+00 : f32
    %12 = vector.broadcast %cst_4 : f32 to vector<16x1xf32>
    %13 = arith.maximumf %11, %12 : vector<16x1xf32>
    %14 = vector.broadcast %7 : vector<16x1xf32> to vector<16x128xf32>
    %15 = arith.subf %0, %14 : vector<16x128xf32>
    %cst_5 = arith.constant 9.99999974E-6 : f32
    %16 = vector.broadcast %cst_5 : f32 to vector<16x1xf32>
    %17 = arith.addf %13, %16 : vector<16x1xf32>
    %18 = math.rsqrt %17 : vector<16x1xf32>
    %19 = vector.broadcast %18 : vector<16x1xf32> to vector<16x128xf32>
    %20 = arith.mulf %15, %19 : vector<16x128xf32>
    %21 = arith.truncf %20 : vector<16x128xf32> to vector<16x128xbf16>
    %c0_6 = arith.constant 0 : index
    %c0_7 = arith.constant 0 : index
    %22 = vector.load %arg3[%c0_6, %c0_7] : memref<128x128xbf16, #tpu.memory_space<vmem>>, vector<128x128xbf16>
    %cst_8 = arith.constant dense<0.000000e+00> : vector<16x128xf32>
    %23 = tpu.matmul %21, %22, %cst_8 {dimension_numbers = #tpu.dot_dimension_numbers<[1], [0], [0], [1], [0, 0, 1, 1], [], []>} : vector<16x128xbf16>, vector<128x128xbf16>, vector<16x128xf32> -> vector<16x128xf32>
    %c0_9 = arith.constant 0 : index
    %c0_10 = arith.constant 0 : index
    %24 = vector.load %arg4[%c0_9, %c0_10] : memref<1x128xf32, #tpu.memory_space<vmem>>, vector<1x128xf32>
    %25 = vector.broadcast %24 : vector<1x128xf32> to vector<16x128xf32>
    %26 = arith.addf %23, %25 : vector<16x128xf32>
    %27 = arith.addf %26, %0 : vector<16x128xf32>
    %c0_11 = arith.constant 0 : index
    %c0_12 = arith.constant 0 : index
    %28 = vector.load %arg5[%c0_11, %c0_12] : memref<16x128xf32, #tpu.memory_space<vmem>>, vector<16x128xf32>
    tpu.vector_store %arg5[%c0_11, %c0_12], %27 {strides = array<i32>} : memref<16x128xf32, #tpu.memory_space<vmem>>, vector<16x128xf32>,
    return
  }
  func.func @transform_0(%arg0: i32, %arg1: i32) -> (i32, i32) {
    %c0_i32 = arith.constant 0 : i32
    %c0_i32_0 = arith.constant 0 : i32
    return %arg0, %c0_i32 : i32, i32
  }
  func.func @transform_1(%arg0: i32, %arg1: i32) -> (i32, i32) {
    %c0_i32 = arith.constant 0 : i32
    %c0_i32_0 = arith.constant 0 : i32
    %c0_i32_1 = arith.constant 0 : i32
    return %c0_i32, %c0_i32_0 : i32, i32
  }
  func.func @transform_2(%arg0: i32, %arg1: i32) -> (i32, i32) {
    %c0_i32 = arith.constant 0 : i32
    %c0_i32_0 = arith.constant 0 : i32
    %c0_i32_1 = arith.constant 0 : i32
    return %c0_i32, %c0_i32_0 : i32, i32
  }
  func.func @transform_3(%arg0: i32, %arg1: i32) -> (i32, i32) {
    %c0_i32 = arith.constant 0 : i32
    return %arg0, %arg1 : i32, i32
  }
}

</mosaic_0001>

<llo_original>
// kernel: tpu_custom_call.1
$region0: #{tpu_custom_call.1}
  #allocation0 [shape = 'u32[]', space=smem, size = 0x4, offset = 0x4, fixed_abs, tag = 'smem constant byte address 0x4 - core index']
  #allocation1 [shape = 'u32[72,128]{1,0:T(1,128)}', space=vmem, size = 0x9000, scoped, tag = 'internal scratch']
  %s0 = inlined_call_operand.hbm [shape: f32[16,128], index: 0, kind: input, shape index: {}]
  %s1 = inlined_call_operand.hbm [shape: bf16[128,128], index: 1, kind: input, shape index: {}]
  %s2 = inlined_call_operand.vmem [shape: f32[1,128], index: 2, kind: input, shape index: {}]
  %s3 = inlined_call_operand.hbm [shape: f32[16,128], index: 3, kind: output, shape index: {}]
  %s4 = sld [smem:[#allocation0]]
  $region30: #{tpu_custom_call.1} parent=0
    _
  %s6 = ssub.s32 1, %s4
  %s7 = scalar_select 0, %s6, %s4
  $region1: #{tpu_custom_call.1} parent=0
    #allocation2 [shape = 'u8[8192]{0}', space=vmem, size = 0x2000, scoped, tag = 'input window, operand 0, single buffered']
    #allocation3 [shape = 's32[1]{0}', space=sflag, size = 0x4, scoped, tag = 'scoped memory for tpu_custom_call.1']
    #allocation4 [shape = 's32[1]{0}', space=sflag, size = 0x4, scoped, tag = 'scoped memory for tpu_custom_call.1']
    #allocation5 [shape = 'u8[32768]{0}', space=vmem, size = 0x8000, scoped, tag = 'input window, operand 1, single buffered']
    #allocation6 [shape = 's32[1]{0}', space=sflag, size = 0x4, scoped, tag = 'scoped memory for tpu_custom_call.1']
    #allocation7 [shape = 'u8[8192]{0}', space=vmem, size = 0x2000, scoped, tag = 'output window, operand 0, single buffered']
    %8 = vsyncpa [#allocation3], 0
    %9 = vsyncpa [#allocation6], 0
    %10 = vsyncpa [#allocation4], 0
    // Predicated region
    $region2: #{tpu_custom_call.1} parent=1 // pred_check
      _
    $region3: #{tpu_custom_call.1} parent=1 // pred_check_branch
      %12 = sbr.rel (0) target = $region5
    $region4: #{tpu_custom_call.1} parent=1 // pred_region
      %14 = vsyncadd [#allocation3], 0
      %s15 = sshll.u32 %s0, 4
      %s16 = int_to_ptr.hbm [resolvable:$true] %s15
      %s17 = sshll.u32 [#allocation2], 4
      %s18 = int_to_ptr.vmem [resolvable:$true] %s17
      %23 = dma.hbm_to_vmem [thread:$0]  %s16, 256, %s18, [#allocation3], 128, 128, 8
    $region5: #{tpu_custom_call.1} parent=1 // pred_fallthru
      _
    // Predicated region
    $region6: #{tpu_custom_call.1} parent=1 // pred_check
      _
    $region7: #{tpu_custom_call.1} parent=1 // pred_check_branch
      %25 = sbr.rel (0) target = $region9
    $region8: #{tpu_custom_call.1} parent=1 // pred_region
      %27 = vsyncadd [#allocation6], 0
      %s28 = sshll.u32 %s1, 4
      %s29 = int_to_ptr.hbm [resolvable:$true] %s28
      %s30 = sshll.u32 [#allocation5], 4
      %s31 = int_to_ptr.vmem [resolvable:$true] %s30
      %36 = dma.hbm_to_vmem [thread:$0]  %s29, 1024, %s31, [#allocation6], 64, 64, 4
    $region9: #{tpu_custom_call.1} parent=1 // pred_fallthru
      _
    // Predicated region
    $region10: #{tpu_custom_call.1} parent=1 // pred_check
      _
    $region11: #{tpu_custom_call.1} parent=1 // pred_check_branch
      %38 = sbr.rel (0) target = $region13
    $region12: #{tpu_custom_call.1} parent=1 // pred_region
      _
    $region13: #{tpu_custom_call.1} parent=1 // pred_fallthru
      _
    // Predicated region
    $region14: #{tpu_custom_call.1} parent=1 // pred_check
      _
    $region15: #{tpu_custom_call.1} parent=1 // pred_check_branch
      %40 = sbr.rel (0) target = $region17
    $region16: #{tpu_custom_call.1} parent=1 // pred_region
      %42 = dma.done [#allocation3], 256
    $region17: #{tpu_custom_call.1} parent=1 // pred_fallthru
      _
    // Predicated region
    $region18: #{tpu_custom_call.1} parent=1 // pred_check
      _
    $region19: #{tpu_custom_call.1} parent=1 // pred_check_branch
      %44 = sbr.rel (0) target = $region21
    $region20: #{tpu_custom_call.1} parent=1 // pred_region
      %46 = dma.done [#allocation6], 1024
    $region21: #{tpu_custom_call.1} parent=1 // pred_fallthru
      _
    %v47 = vld [vmem:[#allocation2] sm:$0xff]
    %v48 = vld [vmem:[#allocation2 + $0x8] sm:$0xff]
    %49 = vadd.xlane.f32.xlu0 %v47
    %v50 = vpop.xlane.xlu0 %49
    %51 = vadd.xlane.f32.xlu0 %v48
    %v52 = vpop.xlane.xlu0 %51
    %v53 = vmul.f32 %v47, %v47
    %v54 = vmul.f32 %v48, %v48
    %55 = vadd.xlane.f32.xlu0 %v53
    %v56 = vpop.xlane.xlu0 %55
    %57 = vadd.xlane.f32.xlu0 %v54
    %v58 = vpop.xlane.xlu0 %57
    %v59 = vmul.f32 %v50, 0.0078125
    %v60 = vmul.f32 %v52, 0.0078125
    %v61 = vmul.f32 %v56, 0.0078125
    %v62 = vmul.f32 %v58, 0.0078125
    %v63 = vmul.f32 %v59, %v59
    %v64 = vmul.f32 %v60, %v60
    %v65 = vsub.f32 %v61, %v63
    %v66 = vsub.f32 %v62, %v64
    %v67 = vmax.f32 %v65, 0.0
    %v68 = vmax.f32 %v66, 0.0
    %v69 = vsub.f32 %v47, %v59
    %v70 = vsub.f32 %v48, %v60
    %v71 = vadd.f32 %v67, 1e-05
    %v72 = vadd.f32 %v68, 1e-05
    %v73 = vrsqrt.pop %v71
    %v74 = vmul.f32 %v73, %v71
    %v75 = vmul.f32 %v74, %v73
    %v76 = vmul.f32 0.5, %v75
    %v77 = vsub.f32 1.5, %v76
    %v78 = vmul.f32 %v73, %v77
    %vm79 = vweird.f32 %v71
    %vm80 = vweird.f32 %v73
    %vm81 = vmor %vm79, %vm80
    %v82 = vsel %vm81, %v73, %v78
    %v83 = vrsqrt.pop %v72
    %v84 = vmul.f32 %v83, %v72
    %v85 = vmul.f32 %v84, %v83
    %v86 = vmul.f32 0.5, %v85
    %v87 = vsub.f32 1.5, %v86
    %v88 = vmul.f32 %v83, %v87
    %vm89 = vweird.f32 %v72
    %vm90 = vweird.f32 %v83
    %vm91 = vmor %vm89, %vm90
    %v92 = vsel %vm91, %v83, %v88
    %v93 = vmul.f32 %v69, %v82
    %v94 = vmul.f32 %v70, %v92
    %v95 = vpack.c.bf16 %v94, %v93
    %v96 = vld [vmem:[#allocation5] sm:$0xf]
    %v97 = vld [vmem:[#allocation5 + $0x4] sm:$0xf]
    %v98 = vld [vmem:[#allocation5 + $0x8] sm:$0xf]
    %v99 = vld [vmem:[#allocation5 + $0xc] sm:$0xf]
    %v100 = vld [vmem:[#allocation5 + $0x10] sm:$0xf]
    %v101 = vld [vmem:[#allocation5 + $0x14] sm:$0xf]
    %v102 = vld [vmem:[#allocation5 + $0x18] sm:$0xf]
    %v103 = vld [vmem:[#allocation5 + $0x1c] sm:$0xf]
    %v104 = vld [vmem:[#allocation5 + $0x20] sm:$0xf]
    %v105 = vld [vmem:[#allocation5 + $0x24] sm:$0xf]
    %v106 = vld [vmem:[#allocation5 + $0x28] sm:$0xf]
    %v107 = vld [vmem:[#allocation5 + $0x2c] sm:$0xf]
    %v108 = vld [vmem:[#allocation5 + $0x30] sm:$0xf]
    %v109 = vld [vmem:[#allocation5 + $0x34] sm:$0xf]
    %v110 = vld [vmem:[#allocation5 + $0x38] sm:$0xf]
    %v111 = vld [vmem:[#allocation5 + $0x3c] sm:$0xf]
    %v112 = vld [vmem:[%s2] sm:$0x1]
    %v114 = vperm.slane %v112, 0
    %v132 = vunpack.c.l.b16 %v96
    %v133 = vunpack.c.l.b16 %v97
    %v134 = vunpack.c.l.b16 %v98
    %v135 = vunpack.c.l.b16 %v99
    %v136 = vunpack.c.l.b16 %v100
    %v137 = vunpack.c.l.b16 %v101
    %v138 = vunpack.c.l.b16 %v102
    %v139 = vunpack.c.l.b16 %v103
    %v140 = vunpack.c.l.b16 %v104
    %v141 = vunpack.c.l.b16 %v105
    %v142 = vunpack.c.l.b16 %v106
    %v143 = vunpack.c.l.b16 %v107
    %v144 = vunpack.c.l.b16 %v108
    %v145 = vunpack.c.l.b16 %v109
    %v146 = vunpack.c.l.b16 %v110
    %v147 = vunpack.c.l.b16 %v111
    %v148 = vpack.c.b16 %v133, %v132
    %v149 = vpack.c.b16 %v135, %v134
    %v150 = vpack.c.b16 %v137, %v136
    %v151 = vpack.c.b16 %v139, %v138
    %v152 = vpack.c.b16 %v141, %v140
    %v153 = vpack.c.b16 %v143, %v142
    %v154 = vpack.c.b16 %v145, %v144
    %v155 = vpack.c.b16 %v147, %v146
    %164 = vmatpush.bf16.msra.mxu0 %v155
    %165 = vmatpush.bf16.msra.mxu0 %v154
    %166 = vmatpush.bf16.msra.mxu0 %v153
    %167 = vmatpush.bf16.msra.mxu0 %v152
    %168 = vmatpush.bf16.msra.mxu0 %v151
    %169 = vmatpush.bf16.msra.mxu0 %v150
    %170 = vmatpush.bf16.msra.mxu0 %v149
    %171 = vmatpush.bf16.msra.mxu0 %v148
    %172 = vmatmul.bf16.gmra.mxu0 %v95
    %v173 = vpop.f32.mrf.mxu0
    %v174 = vadd.f32 %v114, %v173
    %v175 = vpop.f32.mrf.mxu0
    %v176 = vadd.f32 %v114, %v175
    %177 = vdwg.mxu0
    %v178 = vadd.f32 %v174, %v47
    %v179 = vadd.f32 %v176, %v48
    %180 = vst [vmem:[#allocation7] sm:$0xff] %v178
    %181 = vst [vmem:[#allocation7 + $0x8] sm:$0xff] %v179
    // Predicated region
    $region22: #{tpu_custom_call.1} parent=1 // pred_check
      _
    $region23: #{tpu_custom_call.1} parent=1 // pred_check_branch
      %183 = sbr.rel (0) target = $region25
    $region24: #{tpu_custom_call.1} parent=1 // pred_region
      %185 = vsyncadd [#allocation4], 0
      %s186 = sshll.u32 [#allocation7], 4
      %s187 = int_to_ptr.vmem [resolvable:$true] %s186
      %s188 = sshll.u32 %s3, 4
      %s189 = int_to_ptr.hbm [resolvable:$true] %s188
      %194 = dma.vmem_to_hbm [thread:$0]  %s187, 256, %s189, [#allocation4], 128, 128, 8
    $region25: #{tpu_custom_call.1} parent=1 // pred_fallthru
      _
    // Predicated region
    $region26: #{tpu_custom_call.1} parent=1 // pred_check
      _
    $region27: #{tpu_custom_call.1} parent=1 // pred_check_branch
      %196 = sbr.rel (0) target = $region29
    $region28: #{tpu_custom_call.1} parent=1 // pred_region
      %198 = dma.done [#allocation4], 256
    $region29: #{tpu_custom_call.1} parent=1 // pred_fallthru
      _
    %199 = vsyncpa [#allocation3], 1
    %200 = vsyncpa [#allocation6], 1
    %201 = vsyncpa [#allocation4], 1

</llo_original>
